<compile_context>
chip_gen: v7x
topology: tpu7x:2x2x1
jax: 0.10.0
libtpu: 0.0.40
codegen_flags: <defaults>
</compile_context>

<pallas_src>
import math

import jax
import jax.numpy as jnp
from jax.experimental import pallas as pl
from jax.experimental.pallas import tpu as pltpu


_GATE_H = 128      # gate hidden (64) padded to a full lane group


def _round_up(x, m):
    return (x + m - 1) // m * m


# ---------------------------------------------------------------------------
# Kernels (one fused kernel per fusion strategy; operate on a batch tile)
# ---------------------------------------------------------------------------

def _concat_fusion_kernel(l_ref, g_ref, wl_ref, wg_ref, b_ref, o_ref):
    # cat([l, g], -1) @ W + b  ==  l @ W[:L] + g @ W[L:] + b
    out = (jnp.dot(l_ref[...], wl_ref[...], preferred_element_type=jnp.float32)
           + jnp.dot(g_ref[...], wg_ref[...], preferred_element_type=jnp.float32)
           + b_ref[...])
    o_ref[...] = out.astype(o_ref.dtype)


def _add_fusion_kernel(l_ref, g_ref, w_ref, b_ref, o_ref):
    combined = l_ref[...] + g_ref[...]
    out = (jnp.dot(combined, w_ref[...], preferred_element_type=jnp.float32)
           + b_ref[...])
    o_ref[...] = out.astype(o_ref.dtype)


def _attention_fusion_kernel(l_ref, g_ref, wla_ref, bla_ref, wga_ref, bga_ref,
                             wf_ref, bf_ref, o_ref):
    # equal-dim path: combined = w_l * l + w_g * g, then fusion Linear.
    l = l_ref[...]
    g = g_ref[...]
    # 1-lane attention heads via VPU multiply + XLU row-reduce (avoids two MXU
    # fill/drain round-trips whose useful output would be 1/128 of a vreg).
    lstm_att = jax.nn.sigmoid(
        jnp.sum(l * wla_ref[...], axis=-1, keepdims=True) + bla_ref[...])
    gnn_att = jax.nn.sigmoid(
        jnp.sum(g * wga_ref[...], axis=-1, keepdims=True) + bga_ref[...])
    total = lstm_att + gnn_att
    lstm_w = lstm_att / total            # exact (f32) for accuracy margin
    gnn_w = gnn_att / total
    combined = lstm_w * l + gnn_w * g    # stays f32 (K tiny, layer mem-bound)
    out = (jnp.dot(combined, wf_ref[...], preferred_element_type=jnp.float32)
           + bf_ref[...])
    o_ref[...] = out.astype(o_ref.dtype)


def _attention_unequal_kernel(big_ref, wf_ref, bf_ref, o_ref):
    # unequal-dim path: the attention scalars are unused in the PyTorch
    # forward (intentional, mirrors the reference module), so only the fusion
    # Linear on the wider feature is computed and the attention weights are
    # not even DMA'd.
    out = (jnp.dot(big_ref[...], wf_ref[...],
                   preferred_element_type=jnp.float32) + bf_ref[...])
    o_ref[...] = out.astype(o_ref.dtype)


def _gate_fusion_kernel(l_ref, g_ref, wl_ref, wg_ref, bh_ref, w2d_ref, b2d_ref,
                        blp_ref, bgp_ref, o_ref):
    l = l_ref[...]
    g = g_ref[...]
    # One MXU pass per input: packed weight columns [0:_GATE_H) are the gate
    # hidden (64 padded to 128 -> the split is on a vreg boundary, free) and
    # [_GATE_H:) are the per-input projection.
    resl = jnp.dot(l, wl_ref[...], preferred_element_type=jnp.float32)
    resg = jnp.dot(g, wg_ref[...], preferred_element_type=jnp.float32)
    h = jnp.maximum(resl[:, :_GATE_H] + resg[:, :_GATE_H] + bh_ref[...], 0.0)
    # width-2 softmax == sigmoid of the logit difference; VPU dot (no MXU).
    gate0 = jax.nn.sigmoid(
        jnp.sum(h * w2d_ref[...], axis=-1, keepdims=True) + b2d_ref[...])
    lstm_proj = resl[:, _GATE_H:] + blp_ref[...]
    gnn_proj = resg[:, _GATE_H:] + bgp_ref[...]
    o_ref[...] = (gate0 * lstm_proj + (1.0 - gate0) * gnn_proj).astype(o_ref.dtype)


# ---------------------------------------------------------------------------
# pallas_call plumbing
# ---------------------------------------------------------------------------

def _pick_batch_tile(B, batch_tile, row_words):
    """Batch-tile rows per grid step.
    * B <= batch_tile: single full-extent block (one grid step).
    * Otherwise: an even number (>=2) of steps so v7x megacore gets work on
      both TensorCores, each step a multiple of 8 rows (sublane aligned).
    * Capped so double-buffered activations+output stay under ~24 MiB
      (headroom inside v7x's 64 MiB / 32 MiB-scoped VMEM)."""
    vmem_cap_rows = max(8, (24 << 20) // max(1, 2 * 4 * row_words))
    tile = min(batch_tile, vmem_cap_rows)
    if B <= tile:
        return B
    n_steps = -(-B // tile)
    if n_steps % 2:
        n_steps += 1
    return _round_up(-(-B // n_steps), 8)


def _pallas_fusion(kernel, acts, params, out_dim, *, batch_tile,
                   flops, transcendentals):
    B = acts[0].shape[0]
    row_words = sum(a.shape[-1] for a in acts) + out_dim
    tb = _pick_batch_tile(B, batch_tile, row_words)
    grid = (pl.cdiv(B, tb),)

    # NOTE: when B % tb != 0 the last tile reads a few out-of-bounds rows;
    # they flow through the math harmlessly (no FP traps) and their outputs
    # are masked off by the partial output block.
    act_specs = [pl.BlockSpec((tb, a.shape[-1]), lambda i: (i, 0)) for a in acts]
    # weights / biases: full-shape blocks, constant block index -> VMEM-resident
    par_specs = [pl.BlockSpec(p.shape, lambda i: (0, 0)) for p in params]
    # output emitted at its true width (out_dim == full last dim, so legal);
    # avoids a padded-output HBM writeback + external slice pass.
    out_spec = pl.BlockSpec((tb, out_dim), lambda i: (i, 0))

    bytes_accessed = int(
        sum(int(x.size) * x.dtype.itemsize for x in (*acts, *params))
        + B * out_dim * 4)

    return pl.pallas_call(
        kernel,
        out_shape=jax.ShapeDtypeStruct((B, out_dim), jnp.float32),
        grid=grid,
        in_specs=act_specs + par_specs,
        out_specs=out_spec,
        compiler_params=pltpu.CompilerParams(
            dimension_semantics=("parallel",)),
        cost_estimate=pl.CostEstimate(
            flops=int(flops),
            transcendentals=int(transcendentals),
            bytes_accessed=bytes_accessed),
    )(*acts, *params)


def _linear_init(key, in_features, out_features):
    """PyTorch nn.Linear default init; weight returned as [in, out]."""
    k = 1.0 / math.sqrt(in_features)
    kw, kb = jax.random.split(key)
    w = jax.random.uniform(kw, (in_features, out_features), jnp.float32, -k, k)
    b = jax.random.uniform(kb, (1, out_features), jnp.float32, -k, k)
    return w, b


def _pad_cols(x, target):
    pad = target - x.shape[1]
    return jnp.pad(x, ((0, 0), (0, pad))) if pad else x


class FeatureFusionLayer:
    def __init__(self, lstm_dim, gnn_dim, output_dim, fusion_method="concatenate",
                 key=None, batch_tile=2048):
        if key is None:
            key = jax.random.PRNGKey(0)
        self.lstm_dim = lstm_dim
        self.gnn_dim = gnn_dim
        self.output_dim = output_dim
        self.fusion_method = fusion_method
        self.batch_tile = batch_tile
        L, G, O = lstm_dim, gnn_dim, output_dim
        keys = jax.random.split(key, 8)

        if fusion_method == "concatenate":
            w, b = _linear_init(keys[0], L + G, O)
            self.ref_params = dict(w=w, b=b)
            self.params = dict(wl=w[:L], wg=w[L:], b=b)
        elif fusion_method == "add":
            if L != G:
                raise ValueError("LSTM and GNN dimensions must match for 'add' fusion")
            w, b = _linear_init(keys[0], L, O)
            self.ref_params = dict(w=w, b=b)
            self.params = dict(w=w, b=b)
        elif fusion_method == "attention":
            wla, bla = _linear_init(keys[0], L, 1)
            wga, bga = _linear_init(keys[1], G, 1)
            wf, bf = _linear_init(keys[2], max(L, G), O)
            self.ref_params = dict(wla=wla, bla=bla, wga=wga, bga=bga, wf=wf, bf=bf)
            if L == G:
                # attention weights stored as row vectors for VPU dot + row-sum
                self.params = dict(wla=wla.T, bla=bla, wga=wga.T, bga=bga,
                                   wf=wf, bf=bf)
            else:
                self.params = dict(wf=wf, bf=bf)
        elif fusion_method == "gate":
            w1, b1 = _linear_init(keys[0], L + G, 64)
            w2, b2 = _linear_init(keys[1], 64, 2)
            wlp, blp = _linear_init(keys[2], L, O)
            wgp, bgp = _linear_init(keys[3], G, O)
            self.ref_params = dict(w1=w1, b1=b1, w2=w2, b2=b2,
                                   wlp=wlp, blp=blp, wgp=wgp, bgp=bgp)
            # pack [gate-hidden (padded to 128) | projection] per input so the
            # kernel does one MXU pass per input.
            self.params = dict(
                wl=jnp.concatenate([_pad_cols(w1[:L], _GATE_H), wlp], axis=1),
                wg=jnp.concatenate([_pad_cols(w1[L:], _GATE_H), wgp], axis=1),
                bh=_pad_cols(b1, _GATE_H),
                # softmax(width 2) -> sigmoid of logit difference
                w2d=_pad_cols((w2[:, 0:1] - w2[:, 1:2]).T, _GATE_H),
                b2d=b2[:, 0:1] - b2[:, 1:2],
                blp=blp, bgp=bgp)
        else:
            raise ValueError(f"Unknown fusion method: {fusion_method}")

        self._forward = jax.jit(self._make_forward())

    def _make_forward(self):
        p = self.params
        L, G, O = self.lstm_dim, self.gnn_dim, self.output_dim
        bt = self.batch_tile
        method = self.fusion_method

        if method == "concatenate":
            def fwd(l, g):
                B = l.shape[0]
                return _pallas_fusion(
                    _concat_fusion_kernel, [l, g], [p["wl"], p["wg"], p["b"]], O,
                    batch_tile=bt, flops=2 * B * (L + G) * O, transcendentals=0)
        elif method == "add":
            def fwd(l, g):
                B = l.shape[0]
                return _pallas_fusion(
                    _add_fusion_kernel, [l, g], [p["w"], p["b"]], O,
                    batch_tile=bt, flops=2 * B * L * O + B * L, transcendentals=0)
        elif method == "attention" and L == G:
            def fwd(l, g):
                B = l.shape[0]
                return _pallas_fusion(
                    _attention_fusion_kernel, [l, g],
                    [p["wla"], p["bla"], p["wga"], p["bga"], p["wf"], p["bf"]], O,
                    batch_tile=bt,
                    flops=2 * B * (L + G) + 2 * B * L * O + 5 * B * L,
                    transcendentals=2 * B)
        elif method == "attention":
            take_lstm = L > G
            K = max(L, G)
            def fwd(l, g):
                big = l if take_lstm else g
                B = big.shape[0]
                return _pallas_fusion(
                    _attention_unequal_kernel, [big], [p["wf"], p["bf"]], O,
                    batch_tile=bt, flops=2 * B * K * O, transcendentals=0)
        elif method == "gate":
            def fwd(l, g):
                B = l.shape[0]
                return _pallas_fusion(
                    _gate_fusion_kernel, [l, g],
                    [p["wl"], p["wg"], p["bh"], p["w2d"], p["b2d"],
                     p["blp"], p["bgp"]], O,
                    batch_tile=bt,
                    flops=2 * B * (L + G) * (_GATE_H + O) + 2 * B * _GATE_H
                          + 3 * B * O,
                    transcendentals=B)
        else:
            raise ValueError(method)
        return fwd

    def __call__(self, lstm_features, gnn_features):
        return self._forward(lstm_features, gnn_features)

    # pure-JAX f32 reference (mirrors the PyTorch forward exactly)
    def reference(self, l, g):
        p = self.ref_params
        if self.fusion_method == "concatenate":
            return jnp.concatenate([l, g], axis=-1) @ p["w"] + p["b"]
        if self.fusion_method == "add":
            return (l + g) @ p["w"] + p["b"]
        if self.fusion_method == "attention":
            la = jax.nn.sigmoid(l @ p["wla"] + p["bla"])
            ga = jax.nn.sigmoid(g @ p["wga"] + p["bga"])
            tot = la + ga
            if self.lstm_dim == self.gnn_dim:
                combined = (la / tot) * l + (ga / tot) * g
            elif self.lstm_dim > self.gnn_dim:
                combined = l
            else:
                combined = g
            return combined @ p["wf"] + p["bf"]
        if self.fusion_method == "gate":
            h = jnp.maximum(jnp.concatenate([l, g], -1) @ p["w1"] + p["b1"], 0.0)
            gate = jax.nn.softmax(h @ p["w2"] + p["b2"], axis=-1)
            lp = l @ p["wlp"] + p["blp"]
            gp = g @ p["wgp"] + p["bgp"]
            return gate[:, 0:1] * lp + gate[:, 1:2] * gp
        raise ValueError(self.fusion_method)


# ---------------------------------------------------------------------------
# Main
# ---------------------------------------------------------------------------

if __name__ == "__main__":
    key = jax.random.PRNGKey(0)
    k_l, k_g, k_p, k_lu = jax.random.split(key, 4)

    batch, lstm_dim, gnn_dim, output_dim = 256, 32, 32, 16
    lstm_features = jax.random.normal(k_l, (batch, lstm_dim), jnp.float32)
    gnn_features = jax.random.normal(k_g, (batch, gnn_dim), jnp.float32)

    ok = True
    for method in ("concatenate", "add", "attention", "gate"):
        layer = FeatureFusionLayer(lstm_dim, gnn_dim, output_dim,
                                   fusion_method=method, key=k_p)
        out = jax.block_until_ready(layer(lstm_features, gnn_features))
        ref = layer.reference(lstm_features, gnn_features)
        if not jnp.allclose(out, ref, atol=1e-4, rtol=1e-4):
            ok = False
            print(f"MISMATCH in fusion method {method}: "
                  f"max err {jnp.max(jnp.abs(out - ref))}")

    # multi-step grid + partial last tile (small batch_tile only to exercise
    # the streaming pipeline for correctness; default tile is 2048)
    layer_ms = FeatureFusionLayer(lstm_dim, gnn_dim, output_dim,
                                  fusion_method="concatenate", key=k_p,
                                  batch_tile=64)
    l_ms, g_ms = lstm_features[:200], gnn_features[:200]
    out_ms = jax.block_until_ready(layer_ms(l_ms, g_ms))
    ref_ms = layer_ms.reference(l_ms, g_ms)
    if not jnp.allclose(out_ms, ref_ms, atol=1e-4, rtol=1e-4):
        ok = False
        print(f"MISMATCH in multi-step concat: "
              f"max err {jnp.max(jnp.abs(out_ms - ref_ms))}")

    # unequal-dim attention path (attention heads unused, matching PyTorch)
    lstm_u = jax.random.normal(k_lu, (batch, 48), jnp.float32)
    layer_u = FeatureFusionLayer(48, gnn_dim, output_dim,
                                 fusion_method="attention", key=k_p)
    out_u = jax.block_until_ready(layer_u(lstm_u, gnn_features))
    ref_u = layer_u.reference(lstm_u, gnn_features)
    if not jnp.allclose(out_u, ref_u, atol=1e-4, rtol=1e-4):
        ok = False
        print(f"MISMATCH in unequal-dim attention: "
              f"max err {jnp.max(jnp.abs(out_u - ref_u))}")

    if ok:
        print("KERNEL_OK")
</pallas_src>

<mosaic_0001>
module attributes {stable_mosaic.version = 11 : i64} {
  func.func @_concat_fusion_kernel(%arg0: i32, %arg1: memref<256x32xf32, #tpu.memory_space<vmem>>, %arg2: memref<256x32xf32, #tpu.memory_space<vmem>>, %arg3: memref<32x16xf32, #tpu.memory_space<vmem>>, %arg4: memref<32x16xf32, #tpu.memory_space<vmem>>, %arg5: memref<1x16xf32, #tpu.memory_space<vmem>>, %arg6: memref<256x16xf32, #tpu.memory_space<vmem>>) attributes {dimension_semantics = [#tpu.dimension_semantics<parallel>], iteration_bounds = array<i64: 1>, scalar_prefetch = 0 : i64, scratch_operands = 0 : i64, tpu.core_type = #tpu.core_type<tc>, window_params = [{transform_indices = @transform_0, window_bounds = array<i64: 256, 32>}, {transform_indices = @transform_1, window_bounds = array<i64: 256, 32>}, {pipeline_mode = #tpu.pipeline_mode<synchronous>, transform_indices = @transform_2, window_bounds = array<i64: 32, 16>}, {pipeline_mode = #tpu.pipeline_mode<synchronous>, transform_indices = @transform_3, window_bounds = array<i64: 32, 16>}, {pipeline_mode = #tpu.pipeline_mode<synchronous>, transform_indices = @transform_4, window_bounds = array<i64: 1, 16>}, {transform_indices = @transform_5, window_bounds = array<i64: 256, 16>}]} {
    %c0 = arith.constant 0 : index
    %c0_0 = arith.constant 0 : index
    %0 = vector.load %arg1[%c0, %c0_0] : memref<256x32xf32, #tpu.memory_space<vmem>>, vector<256x32xf32>
    %c0_1 = arith.constant 0 : index
    %c0_2 = arith.constant 0 : index
    %1 = vector.load %arg3[%c0_1, %c0_2] : memref<32x16xf32, #tpu.memory_space<vmem>>, vector<32x16xf32>
    %cst = arith.constant dense<0.000000e+00> : vector<256x16xf32>
    %2 = tpu.matmul %0, %1, %cst {dimension_numbers = #tpu.dot_dimension_numbers<[1], [0], [0], [1], [0, 0, 1, 1], [], []>} : vector<256x32xf32>, vector<32x16xf32>, vector<256x16xf32> -> vector<256x16xf32>
    %c0_3 = arith.constant 0 : index
    %c0_4 = arith.constant 0 : index
    %3 = vector.load %arg2[%c0_3, %c0_4] : memref<256x32xf32, #tpu.memory_space<vmem>>, vector<256x32xf32>
    %c0_5 = arith.constant 0 : index
    %c0_6 = arith.constant 0 : index
    %4 = vector.load %arg4[%c0_5, %c0_6] : memref<32x16xf32, #tpu.memory_space<vmem>>, vector<32x16xf32>
    %cst_7 = arith.constant dense<0.000000e+00> : vector<256x16xf32>
    %5 = tpu.matmul %3, %4, %cst_7 {dimension_numbers = #tpu.dot_dimension_numbers<[1], [0], [0], [1], [0, 0, 1, 1], [], []>} : vector<256x32xf32>, vector<32x16xf32>, vector<256x16xf32> -> vector<256x16xf32>
    %6 = arith.addf %2, %5 : vector<256x16xf32>
    %c0_8 = arith.constant 0 : index
    %c0_9 = arith.constant 0 : index
    %7 = vector.load %arg5[%c0_8, %c0_9] : memref<1x16xf32, #tpu.memory_space<vmem>>, vector<1x16xf32>
    %8 = vector.broadcast %7 : vector<1x16xf32> to vector<256x16xf32>
    %9 = arith.addf %6, %8 : vector<256x16xf32>
    %c0_10 = arith.constant 0 : index
    %c0_11 = arith.constant 0 : index
    %10 = vector.load %arg6[%c0_10, %c0_11] : memref<256x16xf32, #tpu.memory_space<vmem>>, vector<256x16xf32>
    tpu.vector_store %arg6[%c0_10, %c0_11], %9 {strides = array<i32>} : memref<256x16xf32, #tpu.memory_space<vmem>>, vector<256x16xf32>,
    return
  }
  func.func @transform_0(%arg0: i32) -> (i32, i32) {
    %c0_i32 = arith.constant 0 : i32
    %c0_i32_0 = arith.constant 0 : i32
    return %arg0, %c0_i32 : i32, i32
  }
  func.func @transform_1(%arg0: i32) -> (i32, i32) {
    %c0_i32 = arith.constant 0 : i32
    %c0_i32_0 = arith.constant 0 : i32
    return %arg0, %c0_i32 : i32, i32
  }
  func.func @transform_2(%arg0: i32) -> (i32, i32) {
    %c0_i32 = arith.constant 0 : i32
    %c0_i32_0 = arith.constant 0 : i32
    %c0_i32_1 = arith.constant 0 : i32
    return %c0_i32, %c0_i32_0 : i32, i32
  }
  func.func @transform_3(%arg0: i32) -> (i32, i32) {
    %c0_i32 = arith.constant 0 : i32
    %c0_i32_0 = arith.constant 0 : i32
    %c0_i32_1 = arith.constant 0 : i32
    return %c0_i32, %c0_i32_0 : i32, i32
  }
  func.func @transform_4(%arg0: i32) -> (i32, i32) {
    %c0_i32 = arith.constant 0 : i32
    %c0_i32_0 = arith.constant 0 : i32
    %c0_i32_1 = arith.constant 0 : i32
    return %c0_i32, %c0_i32_0 : i32, i32
  }
  func.func @transform_5(%arg0: i32) -> (i32, i32) {
    %c0_i32 = arith.constant 0 : i32
    %c0_i32_0 = arith.constant 0 : i32
    return %arg0, %c0_i32 : i32, i32
  }
}

</mosaic_0001>

<llo_original>
// kernel: fwd.1
$region0: #{fwd.1}
  #allocation0 [shape = 'u32[]', space=smem, size = 0x4, offset = 0x4, fixed_abs, tag = 'smem constant byte address 0x4 - core index']
  #allocation1 [shape = 'u32[144,128]{1,0:T(1,128)}', space=vmem, size = 0x12000, scoped, tag = 'internal scratch']
  %s0 = inlined_call_operand.vmem [shape: f32[256,32], index: 0, kind: input, shape index: {}]
  %s1 = inlined_call_operand.vmem [shape: f32[256,32], index: 1, kind: input, shape index: {}]
  %s2 = inlined_call_operand.vmem [shape: f32[32,16], index: 2, kind: input, shape index: {}]
  %s3 = inlined_call_operand.vmem [shape: f32[32,16], index: 3, kind: input, shape index: {}]
  %s4 = inlined_call_operand.vmem [shape: f32[1,16], index: 4, kind: input, shape index: {}]
  %s5 = inlined_call_operand.vmem [shape: f32[256,16], index: 5, kind: output, shape index: {}]
  %s6 = sld [smem:[#allocation0]]
  $region30: #{fwd.1} parent=0
    _
  %s8 = ssub.s32 1, %s6
  %s9 = scalar_select 0, %s8, %s6
  // Predicated region
  $region2: #{fwd.1} parent=0 // pred_check
    _
  $region3: #{fwd.1} parent=0 // pred_check_branch
    %11 = sbr.rel (0) target = $region5
  $region4: #{fwd.1} parent=0 // pred_region
    _
  $region5: #{fwd.1} parent=0 // pred_fallthru
    _
  // Predicated region
  $region6: #{fwd.1} parent=0 // pred_check
    _
  $region7: #{fwd.1} parent=0 // pred_check_branch
    %13 = sbr.rel (0) target = $region9
  $region8: #{fwd.1} parent=0 // pred_region
    _
  $region9: #{fwd.1} parent=0 // pred_fallthru
    _
  // Predicated region
  $region10: #{fwd.1} parent=0 // pred_check
    _
  $region11: #{fwd.1} parent=0 // pred_check_branch
    %15 = sbr.rel (0) target = $region13
  $region12: #{fwd.1} parent=0 // pred_region
    _
  $region13: #{fwd.1} parent=0 // pred_fallthru
    _
  // Predicated region
  $region14: #{fwd.1} parent=0 // pred_check
    _
  $region15: #{fwd.1} parent=0 // pred_check_branch
    %17 = sbr.rel (0) target = $region17
  $region16: #{fwd.1} parent=0 // pred_region
    _
  $region17: #{fwd.1} parent=0 // pred_fallthru
    _
  // Predicated region
  $region18: #{fwd.1} parent=0 // pred_check
    _
  $region19: #{fwd.1} parent=0 // pred_check_branch
    %19 = sbr.rel (0) target = $region21
  $region20: #{fwd.1} parent=0 // pred_region
    _
  $region21: #{fwd.1} parent=0 // pred_fallthru
    _
  %v20 = vld [vmem:[%s0] sm:$0xff]
  %v21 = vld [vmem:[%s0 + $0x8] sm:$0xff]
  %v22 = vld [vmem:[%s0 + $0x10] sm:$0xff]
  %v23 = vld [vmem:[%s0 + $0x18] sm:$0xff]
  %v24 = vld [vmem:[%s0 + $0x20] sm:$0xff]
  %v25 = vld [vmem:[%s0 + $0x28] sm:$0xff]
  %v26 = vld [vmem:[%s0 + $0x30] sm:$0xff]
  %v27 = vld [vmem:[%s0 + $0x38] sm:$0xff]
  %v28 = vld [vmem:[%s0 + $0x40] sm:$0xff]
  %v29 = vld [vmem:[%s0 + $0x48] sm:$0xff]
  %v30 = vld [vmem:[%s0 + $0x50] sm:$0xff]
  %v31 = vld [vmem:[%s0 + $0x58] sm:$0xff]
  %v32 = vld [vmem:[%s0 + $0x60] sm:$0xff]
  %v33 = vld [vmem:[%s0 + $0x68] sm:$0xff]
  %v34 = vld [vmem:[%s0 + $0x70] sm:$0xff]
  %v35 = vld [vmem:[%s0 + $0x78] sm:$0xff]
  %v36 = vld [vmem:[%s0 + $0x80] sm:$0xff]
  %v37 = vld [vmem:[%s0 + $0x88] sm:$0xff]
  %v38 = vld [vmem:[%s0 + $0x90] sm:$0xff]
  %v39 = vld [vmem:[%s0 + $0x98] sm:$0xff]
  %v40 = vld [vmem:[%s0 + $0xa0] sm:$0xff]
  %v41 = vld [vmem:[%s0 + $0xa8] sm:$0xff]
  %v42 = vld [vmem:[%s0 + $0xb0] sm:$0xff]
  %v43 = vld [vmem:[%s0 + $0xb8] sm:$0xff]
  %v44 = vld [vmem:[%s0 + $0xc0] sm:$0xff]
  %v45 = vld [vmem:[%s0 + $0xc8] sm:$0xff]
  %v46 = vld [vmem:[%s0 + $0xd0] sm:$0xff]
  %v47 = vld [vmem:[%s0 + $0xd8] sm:$0xff]
  %v48 = vld [vmem:[%s0 + $0xe0] sm:$0xff]
  %v49 = vld [vmem:[%s0 + $0xe8] sm:$0xff]
  %v50 = vld [vmem:[%s0 + $0xf0] sm:$0xff]
  %v51 = vld [vmem:[%s0 + $0xf8] sm:$0xff]
  %v52 = vld [vmem:[%s2] sm:$0xff]
  %v53 = vld [vmem:[%s2 + $0x8] sm:$0xff]
  %v54 = vld [vmem:[%s2 + $0x10] sm:$0xff]
  %v55 = vld [vmem:[%s2 + $0x18] sm:$0xff]
  %v56 = vld [vmem:[%s1] sm:$0xff]
  %v57 = vld [vmem:[%s1 + $0x8] sm:$0xff]
  %v58 = vld [vmem:[%s1 + $0x10] sm:$0xff]
  %v59 = vld [vmem:[%s1 + $0x18] sm:$0xff]
  %v60 = vld [vmem:[%s1 + $0x20] sm:$0xff]
  %v61 = vld [vmem:[%s1 + $0x28] sm:$0xff]
  %v62 = vld [vmem:[%s1 + $0x30] sm:$0xff]
  %v63 = vld [vmem:[%s1 + $0x38] sm:$0xff]
  %v64 = vld [vmem:[%s1 + $0x40] sm:$0xff]
  %v65 = vld [vmem:[%s1 + $0x48] sm:$0xff]
  %v66 = vld [vmem:[%s1 + $0x50] sm:$0xff]
  %v67 = vld [vmem:[%s1 + $0x58] sm:$0xff]
  %v68 = vld [vmem:[%s1 + $0x60] sm:$0xff]
  %v69 = vld [vmem:[%s1 + $0x68] sm:$0xff]
  %v70 = vld [vmem:[%s1 + $0x70] sm:$0xff]
  %v71 = vld [vmem:[%s1 + $0x78] sm:$0xff]
  %v72 = vld [vmem:[%s1 + $0x80] sm:$0xff]
  %v73 = vld [vmem:[%s1 + $0x88] sm:$0xff]
  %v74 = vld [vmem:[%s1 + $0x90] sm:$0xff]
  %v75 = vld [vmem:[%s1 + $0x98] sm:$0xff]
  %v76 = vld [vmem:[%s1 + $0xa0] sm:$0xff]
  %v77 = vld [vmem:[%s1 + $0xa8] sm:$0xff]
  %v78 = vld [vmem:[%s1 + $0xb0] sm:$0xff]
  %v79 = vld [vmem:[%s1 + $0xb8] sm:$0xff]
  %v80 = vld [vmem:[%s1 + $0xc0] sm:$0xff]
  %v81 = vld [vmem:[%s1 + $0xc8] sm:$0xff]
  %v82 = vld [vmem:[%s1 + $0xd0] sm:$0xff]
  %v83 = vld [vmem:[%s1 + $0xd8] sm:$0xff]
  %v84 = vld [vmem:[%s1 + $0xe0] sm:$0xff]
  %v85 = vld [vmem:[%s1 + $0xe8] sm:$0xff]
  %v86 = vld [vmem:[%s1 + $0xf0] sm:$0xff]
  %v87 = vld [vmem:[%s1 + $0xf8] sm:$0xff]
  %v88 = vld [vmem:[%s3] sm:$0xff]
  %v89 = vld [vmem:[%s3 + $0x8] sm:$0xff]
  %v90 = vld [vmem:[%s3 + $0x10] sm:$0xff]
  %v91 = vld [vmem:[%s3 + $0x18] sm:$0xff]
  %vm92 = vcmask 261120
  %v94 = vsel %vm92, %v56, 0
  %v97 = vsel %vm92, %v57, 0
  %v100 = vsel %vm92, %v58, 0
  %v103 = vsel %vm92, %v59, 0
  %v106 = vsel %vm92, %v60, 0
  %v109 = vsel %vm92, %v61, 0
  %v112 = vsel %vm92, %v62, 0
  %v115 = vsel %vm92, %v63, 0
  %v118 = vsel %vm92, %v64, 0
  %v121 = vsel %vm92, %v65, 0
  %v124 = vsel %vm92, %v66, 0
  %v127 = vsel %vm92, %v67, 0
  %v130 = vsel %vm92, %v68, 0
  %v133 = vsel %vm92, %v69, 0
  %v136 = vsel %vm92, %v70, 0
  %v139 = vsel %vm92, %v71, 0
  %v142 = vsel %vm92, %v72, 0
  %v145 = vsel %vm92, %v73, 0
  %v148 = vsel %vm92, %v74, 0
  %v151 = vsel %vm92, %v75, 0
  %v154 = vsel %vm92, %v76, 0
  %v157 = vsel %vm92, %v77, 0
  %v160 = vsel %vm92, %v78, 0
  %v163 = vsel %vm92, %v79, 0
  %v166 = vsel %vm92, %v80, 0
  %v169 = vsel %vm92, %v81, 0
  %v172 = vsel %vm92, %v82, 0
  %v175 = vsel %vm92, %v83, 0
  %v178 = vsel %vm92, %v84, 0
  %v181 = vsel %vm92, %v85, 0
  %v184 = vsel %vm92, %v86, 0
  %v187 = vsel %vm92, %v87, 0
  %189 = vmatprep.subr.mxu0 0.0
  %190 = vmatpush1.msra.mxu0 %v88
  %191 = vmatprep.subr.mxu0 0.0
  %192 = vmatpush1.msra.mxu0 %v89
  %193 = vmatprep.subr.mxu0 0.0
  %194 = vmatpush1.msra.mxu0 %v90
  %195 = vmatprep.subr.mxu0 0.0
  %196 = vmatpush1.msra.mxu0 %v91
  %197 = vmatprep.subr.mxu0 0.0
  %198 = vmatpush1.msra.mxu0 0.0
  %199 = vmatprep.subr.mxu0 0.0
  %200 = vmatpush1.msra.mxu0 0.0
  %201 = vmatprep.subr.mxu0 0.0
  %202 = vmatpush1.msra.mxu0 0.0
  %203 = vmatprep.subr.mxu0 0.0
  %204 = vmatpush1.msra.mxu0 0.0
  %205 = vmatprep.subr.mxu0 0.0
  %206 = vmatpush1.msra.mxu0 0.0
  %207 = vmatprep.subr.mxu0 0.0
  %208 = vmatpush1.msra.mxu0 0.0
  %209 = vmatprep.subr.mxu0 0.0
  %210 = vmatpush1.msra.mxu0 0.0
  %211 = vmatprep.subr.mxu0 0.0
  %212 = vmatpush1.msra.mxu0 0.0
  %213 = vmatprep.subr.mxu0 0.0
  %214 = vmatpush1.msra.mxu0 0.0
  %215 = vmatprep.subr.mxu0 0.0
  %216 = vmatpush1.msra.mxu0 0.0
  %217 = vmatprep.subr.mxu0 0.0
  %218 = vmatpush1.msra.mxu0 0.0
  %219 = vmatprep.subr.mxu0 0.0
  %220 = vmatpush1.msra.mxu0 0.0
  %221 = vmatprep.subr.mxu0 0.0
  %222 = vmatpush1.msra.mxu0 0.0
  %223 = vmatprep.subr.mxu0 0.0
  %224 = vmatpush1.msra.mxu0 0.0
  %225 = vmatprep.subr.mxu0 0.0
  %226 = vmatpush1.msra.mxu0 0.0
  %227 = vmatprep.subr.mxu0 0.0
  %228 = vmatpush1.msra.mxu0 0.0
  %229 = vmatprep.subr.mxu0 0.0
  %230 = vmatpush1.msra.mxu0 0.0
  %231 = vmatprep.subr.mxu0 0.0
  %232 = vmatpush1.msra.mxu0 0.0
  %233 = vmatprep.subr.mxu0 0.0
  %234 = vmatpush1.msra.mxu0 0.0
  %235 = vmatprep.subr.mxu0 0.0
  %236 = vmatpush1.msra.mxu0 0.0
  %237 = vmatprep.subr.mxu0 0.0
  %238 = vmatpush1.msra.mxu0 0.0
  %239 = vmatprep.subr.mxu0 0.0
  %240 = vmatpush1.msra.mxu0 0.0
  %241 = vmatprep.subr.mxu0 0.0
  %242 = vmatpush1.msra.mxu0 0.0
  %243 = vmatprep.subr.mxu0 0.0
  %244 = vmatpush1.msra.mxu0 0.0
  %245 = vmatprep.subr.mxu0 0.0
  %246 = vmatpush1.msra.mxu0 0.0
  %247 = vmatprep.subr.mxu0 0.0
  %248 = vmatpush1.msra.mxu0 0.0
  %249 = vmatprep.subr.mxu0 0.0
  %250 = vmatpush1.msra.mxu0 0.0
  %251 = vmatprep.subr.mxu0 0.0
  %252 = vmatpush1.msra.mxu0 0.0
  %253 = vmatprep.mubr.f32.mxu0 0.0
  %254 = vmatmul.mubr.f32.gmra.mrb[0].mxu0 %v94
  %v255 = vpop.f32.mrb[0].mxu0
  %v256 = vadd.f32 0.0, %v255
  %v257 = vpop.f32.mrb[0].mxu0
  %258 = vmatprep.mubr.f32.mxu0 0.0
  %259 = vmatmul.mubr.f32.gmra.mrb[0].mxu0 %v97
  %v260 = vpop.f32.mrb[0].mxu0
  %v261 = vadd.f32 0.0, %v260
  %v262 = vpop.f32.mrb[0].mxu0
  %263 = vmatprep.mubr.f32.mxu0 0.0
  %264 = vmatmul.mubr.f32.gmra.mrb[0].mxu0 %v100
  %v265 = vpop.f32.mrb[0].mxu0
  %v266 = vadd.f32 0.0, %v265
  %v267 = vpop.f32.mrb[0].mxu0
  %268 = vmatprep.mubr.f32.mxu0 0.0
  %269 = vmatmul.mubr.f32.gmra.mrb[0].mxu0 %v103
  %v270 = vpop.f32.mrb[0].mxu0
  %v271 = vadd.f32 0.0, %v270
  %v272 = vpop.f32.mrb[0].mxu0
  %273 = vmatprep.mubr.f32.mxu0 0.0
  %274 = vmatmul.mubr.f32.gmra.mrb[0].mxu0 %v106
  %v275 = vpop.f32.mrb[0].mxu0
  %v276 = vadd.f32 0.0, %v275
  %v277 = vpop.f32.mrb[0].mxu0
  %278 = vmatprep.mubr.f32.mxu0 0.0
  %279 = vmatmul.mubr.f32.gmra.mrb[0].mxu0 %v109
  %v280 = vpop.f32.mrb[0].mxu0
  %v281 = vadd.f32 0.0, %v280
  %v282 = vpop.f32.mrb[0].mxu0
  %283 = vmatprep.mubr.f32.mxu0 0.0
  %284 = vmatmul.mubr.f32.gmra.mrb[0].mxu0 %v112
  %v285 = vpop.f32.mrb[0].mxu0
  %v286 = vadd.f32 0.0, %v285
  %v287 = vpop.f32.mrb[0].mxu0
  %288 = vmatprep.mubr.f32.mxu0 0.0
  %289 = vmatmul.mubr.f32.gmra.mrb[0].mxu0 %v115
  %v290 = vpop.f32.mrb[0].mxu0
  %v291 = vadd.f32 0.0, %v290
  %v292 = vpop.f32.mrb[0].mxu0
  %293 = vmatprep.mubr.f32.mxu0 0.0
  %294 = vmatmul.mubr.f32.gmra.mrb[0].mxu0 %v118
  %v295 = vpop.f32.mrb[0].mxu0
  %v296 = vadd.f32 0.0, %v295
  %v297 = vpop.f32.mrb[0].mxu0
  %298 = vmatprep.mubr.f32.mxu0 0.0
  %299 = vmatmul.mubr.f32.gmra.mrb[0].mxu0 %v121
  %v300 = vpop.f32.mrb[0].mxu0
  %v301 = vadd.f32 0.0, %v300
  %v302 = vpop.f32.mrb[0].mxu0
  %303 = vmatprep.mubr.f32.mxu0 0.0
  %304 = vmatmul.mubr.f32.gmra.mrb[0].mxu0 %v124
  %v305 = vpop.f32.mrb[0].mxu0
  %v306 = vadd.f32 0.0, %v305
  %v307 = vpop.f32.mrb[0].mxu0
  %308 = vmatprep.mubr.f32.mxu0 0.0
  %309 = vmatmul.mubr.f32.gmra.mrb[0].mxu0 %v127
  %v310 = vpop.f32.mrb[0].mxu0
  %v311 = vadd.f32 0.0, %v310
  %v312 = vpop.f32.mrb[0].mxu0
  %313 = vmatprep.mubr.f32.mxu0 0.0
  %314 = vmatmul.mubr.f32.gmra.mrb[0].mxu0 %v130
  %v315 = vpop.f32.mrb[0].mxu0
  %v316 = vadd.f32 0.0, %v315
  %v317 = vpop.f32.mrb[0].mxu0
  %318 = vmatprep.mubr.f32.mxu0 0.0
  %319 = vmatmul.mubr.f32.gmra.mrb[0].mxu0 %v133
  %v320 = vpop.f32.mrb[0].mxu0
  %v321 = vadd.f32 0.0, %v320
  %v322 = vpop.f32.mrb[0].mxu0
  %323 = vmatprep.mubr.f32.mxu0 0.0
  %324 = vmatmul.mubr.f32.gmra.mrb[0].mxu0 %v136
  %v325 = vpop.f32.mrb[0].mxu0
  %v326 = vadd.f32 0.0, %v325
  %v327 = vpop.f32.mrb[0].mxu0
  %328 = vmatprep.mubr.f32.mxu0 0.0
  %329 = vmatmul.mubr.f32.gmra.mrb[0].mxu0 %v139
  %v330 = vpop.f32.mrb[0].mxu0
  %v331 = vadd.f32 0.0, %v330
  %v332 = vpop.f32.mrb[0].mxu0
  %333 = vmatprep.mubr.f32.mxu0 0.0
  %334 = vmatmul.mubr.f32.gmra.mrb[0].mxu0 %v142
  %v335 = vpop.f32.mrb[0].mxu0
  %v336 = vadd.f32 0.0, %v335
  %v337 = vpop.f32.mrb[0].mxu0
  %338 = vmatprep.mubr.f32.mxu0 0.0
  %339 = vmatmul.mubr.f32.gmra.mrb[0].mxu0 %v145
  %v340 = vpop.f32.mrb[0].mxu0
  %v341 = vadd.f32 0.0, %v340
  %v342 = vpop.f32.mrb[0].mxu0
  %343 = vmatprep.mubr.f32.mxu0 0.0
  %344 = vmatmul.mubr.f32.gmra.mrb[0].mxu0 %v148
  %v345 = vpop.f32.mrb[0].mxu0
  %v346 = vadd.f32 0.0, %v345
  %v347 = vpop.f32.mrb[0].mxu0
  %348 = vmatprep.mubr.f32.mxu0 0.0
  %349 = vmatmul.mubr.f32.gmra.mrb[0].mxu0 %v151
  %v350 = vpop.f32.mrb[0].mxu0
  %v351 = vadd.f32 0.0, %v350
  %v352 = vpop.f32.mrb[0].mxu0
  %353 = vmatprep.mubr.f32.mxu0 0.0
  %354 = vmatmul.mubr.f32.gmra.mrb[0].mxu0 %v154
  %v355 = vpop.f32.mrb[0].mxu0
  %v356 = vadd.f32 0.0, %v355
  %v357 = vpop.f32.mrb[0].mxu0
  %358 = vmatprep.mubr.f32.mxu0 0.0
  %359 = vmatmul.mubr.f32.gmra.mrb[0].mxu0 %v157
  %v360 = vpop.f32.mrb[0].mxu0
  %v361 = vadd.f32 0.0, %v360
  %v362 = vpop.f32.mrb[0].mxu0
  %363 = vmatprep.mubr.f32.mxu0 0.0
  %364 = vmatmul.mubr.f32.gmra.mrb[0].mxu0 %v160
  %v365 = vpop.f32.mrb[0].mxu0
  %v366 = vadd.f32 0.0, %v365
  %v367 = vpop.f32.mrb[0].mxu0
  %368 = vmatprep.mubr.f32.mxu0 0.0
  %369 = vmatmul.mubr.f32.gmra.mrb[0].mxu0 %v163
  %v370 = vpop.f32.mrb[0].mxu0
  %v371 = vadd.f32 0.0, %v370
  %v372 = vpop.f32.mrb[0].mxu0
  %373 = vmatprep.mubr.f32.mxu0 0.0
  %374 = vmatmul.mubr.f32.gmra.mrb[0].mxu0 %v166
  %v375 = vpop.f32.mrb[0].mxu0
  %v376 = vadd.f32 0.0, %v375
  %v377 = vpop.f32.mrb[0].mxu0
  %378 = vmatprep.mubr.f32.mxu0 0.0
  %379 = vmatmul.mubr.f32.gmra.mrb[0].mxu0 %v169
  %v380 = vpop.f32.mrb[0].mxu0
  %v381 = vadd.f32 0.0, %v380
  %v382 = vpop.f32.mrb[0].mxu0
  %383 = vmatprep.mubr.f32.mxu0 0.0
  %384 = vmatmul.mubr.f32.gmra.mrb[0].mxu0 %v172
  %v385 = vpop.f32.mrb[0].mxu0
  %v386 = vadd.f32 0.0, %v385
  %v387 = vpop.f32.mrb[0].mxu0
  %388 = vmatprep.mubr.f32.mxu0 0.0
  %389 = vmatmul.mubr.f32.gmra.mrb[0].mxu0 %v175
  %v390 = vpop.f32.mrb[0].mxu0
  %v391 = vadd.f32 0.0, %v390
  %v392 = vpop.f32.mrb[0].mxu0
  %393 = vmatprep.mubr.f32.mxu0 0.0
  %394 = vmatmul.mubr.f32.gmra.mrb[0].mxu0 %v178
  %v395 = vpop.f32.mrb[0].mxu0
  %v396 = vadd.f32 0.0, %v395
  %v397 = vpop.f32.mrb[0].mxu0
  %398 = vmatprep.mubr.f32.mxu0 0.0
  %399 = vmatmul.mubr.f32.gmra.mrb[0].mxu0 %v181
  %v400 = vpop.f32.mrb[0].mxu0
  %v401 = vadd.f32 0.0, %v400
  %v402 = vpop.f32.mrb[0].mxu0
  %403 = vmatprep.mubr.f32.mxu0 0.0
  %404 = vmatmul.mubr.f32.gmra.mrb[0].mxu0 %v184
  %v405 = vpop.f32.mrb[0].mxu0
  %v406 = vadd.f32 0.0, %v405
  %v407 = vpop.f32.mrb[0].mxu0
  %408 = vmatprep.mubr.f32.mxu0 0.0
  %409 = vmatmul.mubr.f32.gmra.mrb[0].mxu0 %v187
  %v410 = vpop.f32.mrb[0].mxu0
  %v411 = vadd.f32 0.0, %v410
  %v412 = vpop.f32.mrb[0].mxu0
  %413 = vdwg.mxu0
  %v415 = vsel %vm92, %v20, 0
  %v418 = vsel %vm92, %v21, 0
  %v421 = vsel %vm92, %v22, 0
  %v424 = vsel %vm92, %v23, 0
  %v427 = vsel %vm92, %v24, 0
  %v430 = vsel %vm92, %v25, 0
  %v433 = vsel %vm92, %v26, 0
  %v436 = vsel %vm92, %v27, 0
  %v439 = vsel %vm92, %v28, 0
  %v442 = vsel %vm92, %v29, 0
  %v445 = vsel %vm92, %v30, 0
  %v448 = vsel %vm92, %v31, 0
  %v451 = vsel %vm92, %v32, 0
  %v454 = vsel %vm92, %v33, 0
  %v457 = vsel %vm92, %v34, 0
  %v460 = vsel %vm92, %v35, 0
  %v463 = vsel %vm92, %v36, 0
  %v466 = vsel %vm92, %v37, 0
  %v469 = vsel %vm92, %v38, 0
  %v472 = vsel %vm92, %v39, 0
  %v475 = vsel %vm92, %v40, 0
  %v478 = vsel %vm92, %v41, 0
  %v481 = vsel %vm92, %v42, 0
  %v484 = vsel %vm92, %v43, 0
  %v487 = vsel %vm92, %v44, 0
  %v490 = vsel %vm92, %v45, 0
  %v493 = vsel %vm92, %v46, 0
  %v496 = vsel %vm92, %v47, 0
  %v499 = vsel %vm92, %v48, 0
  %v502 = vsel %vm92, %v49, 0
  %v505 = vsel %vm92, %v50, 0
  %v508 = vsel %vm92, %v51, 0
  %510 = vmatprep.subr.mxu0 0.0
  %511 = vmatpush1.msra.mxu0 %v52
  %512 = vmatprep.subr.mxu0 0.0
  %513 = vmatpush1.msra.mxu0 %v53
  %514 = vmatprep.subr.mxu0 0.0
  %515 = vmatpush1.msra.mxu0 %v54
  %516 = vmatprep.subr.mxu0 0.0
  %517 = vmatpush1.msra.mxu0 %v55
  %518 = vmatprep.subr.mxu0 0.0
  %519 = vmatpush1.msra.mxu0 0.0
  %520 = vmatprep.subr.mxu0 0.0
  %521 = vmatpush1.msra.mxu0 0.0
  %522 = vmatprep.subr.mxu0 0.0
  %523 = vmatpush1.msra.mxu0 0.0
  %524 = vmatprep.subr.mxu0 0.0
  %525 = vmatpush1.msra.mxu0 0.0
  %526 = vmatprep.subr.mxu0 0.0
  %527 = vmatpush1.msra.mxu0 0.0
  %528 = vmatprep.subr.mxu0 0.0
  %529 = vmatpush1.msra.mxu0 0.0
  %530 = vmatprep.subr.mxu0 0.0
  %531 = vmatpush1.msra.mxu0 0.0
  %532 = vmatprep.subr.mxu0 0.0
  %533 = vmatpush1.msra.mxu0 0.0
  %534 = vmatprep.subr.mxu0 0.0
  %535 = vmatpush1.msra.mxu0 0.0
  %536 = vmatprep.subr.mxu0 0.0
  %537 = vmatpush1.msra.mxu0 0.0
  %538 = vmatprep.subr.mxu0 0.0
  %539 = vmatpush1.msra.mxu0 0.0
  %540 = vmatprep.subr.mxu0 0.0
  %541 = vmatpush1.msra.mxu0 0.0
  %542 = vmatprep.subr.mxu0 0.0
  %543 = vmatpush1.msra.mxu0 0.0
  %544 = vmatprep.subr.mxu0 0.0
  %545 = vmatpush1.msra.mxu0 0.0
  %546 = vmatprep.subr.mxu0 0.0
  %547 = vmatpush1.msra.mxu0 0.0
  %548 = vmatprep.subr.mxu0 0.0
  %549 = vmatpush1.msra.mxu0 0.0
  %550 = vmatprep.subr.mxu0 0.0
  %551 = vmatpush1.msra.mxu0 0.0
  %552 = vmatprep.subr.mxu0 0.0
  %553 = vmatpush1.msra.mxu0 0.0
  %554 = vmatprep.subr.mxu0 0.0
  %555 = vmatpush1.msra.mxu0 0.0
  %556 = vmatprep.subr.mxu0 0.0
  %557 = vmatpush1.msra.mxu0 0.0
  %558 = vmatprep.subr.mxu0 0.0
  %559 = vmatpush1.msra.mxu0 0.0
  %560 = vmatprep.subr.mxu0 0.0
  %561 = vmatpush1.msra.mxu0 0.0
  %562 = vmatprep.subr.mxu0 0.0
  %563 = vmatpush1.msra.mxu0 0.0
  %564 = vmatprep.subr.mxu0 0.0
  %565 = vmatpush1.msra.mxu0 0.0
  %566 = vmatprep.subr.mxu0 0.0
  %567 = vmatpush1.msra.mxu0 0.0
  %568 = vmatprep.subr.mxu0 0.0
  %569 = vmatpush1.msra.mxu0 0.0
  %570 = vmatprep.subr.mxu0 0.0
  %571 = vmatpush1.msra.mxu0 0.0
  %572 = vmatprep.subr.mxu0 0.0
  %573 = vmatpush1.msra.mxu0 0.0
  %574 = vmatprep.mubr.f32.mxu0 0.0
  %575 = vmatmul.mubr.f32.gmra.mrb[0].mxu0 %v415
  %v576 = vpop.f32.mrb[0].mxu0
  %v577 = vadd.f32 %v256, %v576
  %v578 = vpop.f32.mrb[0].mxu0
  %579 = vmatprep.mubr.f32.mxu0 0.0
  %580 = vmatmul.mubr.f32.gmra.mrb[0].mxu0 %v418
  %v581 = vpop.f32.mrb[0].mxu0
  %v582 = vadd.f32 %v261, %v581
  %v583 = vpop.f32.mrb[0].mxu0
  %584 = vmatprep.mubr.f32.mxu0 0.0
  %585 = vmatmul.mubr.f32.gmra.mrb[0].mxu0 %v421
  %v586 = vpop.f32.mrb[0].mxu0
  %v587 = vadd.f32 %v266, %v586
  %v588 = vpop.f32.mrb[0].mxu0
  %589 = vmatprep.mubr.f32.mxu0 0.0
  %590 = vmatmul.mubr.f32.gmra.mrb[0].mxu0 %v424
  %v591 = vpop.f32.mrb[0].mxu0
  %v592 = vadd.f32 %v271, %v591
  %v593 = vpop.f32.mrb[0].mxu0
  %594 = vmatprep.mubr.f32.mxu0 0.0
  %595 = vmatmul.mubr.f32.gmra.mrb[0].mxu0 %v427
  %v596 = vpop.f32.mrb[0].mxu0
  %v597 = vadd.f32 %v276, %v596
  %v598 = vpop.f32.mrb[0].mxu0
  %599 = vmatprep.mubr.f32.mxu0 0.0
  %600 = vmatmul.mubr.f32.gmra.mrb[0].mxu0 %v430
  %v601 = vpop.f32.mrb[0].mxu0
  %v602 = vadd.f32 %v281, %v601
  %v603 = vpop.f32.mrb[0].mxu0
  %604 = vmatprep.mubr.f32.mxu0 0.0
  %605 = vmatmul.mubr.f32.gmra.mrb[0].mxu0 %v433
  %v606 = vpop.f32.mrb[0].mxu0
  %v607 = vadd.f32 %v286, %v606
  %v608 = vpop.f32.mrb[0].mxu0
  %609 = vmatprep.mubr.f32.mxu0 0.0
  %610 = vmatmul.mubr.f32.gmra.mrb[0].mxu0 %v436
  %v611 = vpop.f32.mrb[0].mxu0
  %v612 = vadd.f32 %v291, %v611
  %v613 = vpop.f32.mrb[0].mxu0
  %614 = vmatprep.mubr.f32.mxu0 0.0
  %615 = vmatmul.mubr.f32.gmra.mrb[0].mxu0 %v439
  %v616 = vpop.f32.mrb[0].mxu0
  %v617 = vadd.f32 %v296, %v616
  %v618 = vpop.f32.mrb[0].mxu0
  %619 = vmatprep.mubr.f32.mxu0 0.0
  %620 = vmatmul.mubr.f32.gmra.mrb[0].mxu0 %v442
  %v621 = vpop.f32.mrb[0].mxu0
  %v622 = vadd.f32 %v301, %v621
  %v623 = vpop.f32.mrb[0].mxu0
  %624 = vmatprep.mubr.f32.mxu0 0.0
  %625 = vmatmul.mubr.f32.gmra.mrb[0].mxu0 %v445
  %v626 = vpop.f32.mrb[0].mxu0
  %v627 = vadd.f32 %v306, %v626
  %v628 = vpop.f32.mrb[0].mxu0
  %629 = vmatprep.mubr.f32.mxu0 0.0
  %630 = vmatmul.mubr.f32.gmra.mrb[0].mxu0 %v448
  %v631 = vpop.f32.mrb[0].mxu0
  %v632 = vadd.f32 %v311, %v631
  %v633 = vpop.f32.mrb[0].mxu0
  %634 = vmatprep.mubr.f32.mxu0 0.0
  %635 = vmatmul.mubr.f32.gmra.mrb[0].mxu0 %v451
  %v636 = vpop.f32.mrb[0].mxu0
  %v637 = vadd.f32 %v316, %v636
  %v638 = vpop.f32.mrb[0].mxu0
  %639 = vmatprep.mubr.f32.mxu0 0.0
  %640 = vmatmul.mubr.f32.gmra.mrb[0].mxu0 %v454
  %v641 = vpop.f32.mrb[0].mxu0
  %v642 = vadd.f32 %v321, %v641
  %v643 = vpop.f32.mrb[0].mxu0
  %644 = vmatprep.mubr.f32.mxu0 0.0
  %645 = vmatmul.mubr.f32.gmra.mrb[0].mxu0 %v457
  %v646 = vpop.f32.mrb[0].mxu0
  %v647 = vadd.f32 %v326, %v646
  %v648 = vpop.f32.mrb[0].mxu0
  %649 = vmatprep.mubr.f32.mxu0 0.0
  %650 = vmatmul.mubr.f32.gmra.mrb[0].mxu0 %v460
  %v651 = vpop.f32.mrb[0].mxu0
  %v652 = vadd.f32 %v331, %v651
  %v653 = vpop.f32.mrb[0].mxu0
  %654 = vmatprep.mubr.f32.mxu0 0.0
  %655 = vmatmul.mubr.f32.gmra.mrb[0].mxu0 %v463
  %v656 = vpop.f32.mrb[0].mxu0
  %v657 = vadd.f32 %v336, %v656
  %v658 = vpop.f32.mrb[0].mxu0
  %659 = vmatprep.mubr.f32.mxu0 0.0
  %660 = vmatmul.mubr.f32.gmra.mrb[0].mxu0 %v466
  %v661 = vpop.f32.mrb[0].mxu0
  %v662 = vadd.f32 %v341, %v661
  %v663 = vpop.f32.mrb[0].mxu0
  %664 = vmatprep.mubr.f32.mxu0 0.0
  %665 = vmatmul.mubr.f32.gmra.mrb[0].mxu0 %v469
  %v666 = vpop.f32.mrb[0].mxu0
  %v667 = vadd.f32 %v346, %v666
  %v668 = vpop.f32.mrb[0].mxu0
  %669 = vmatprep.mubr.f32.mxu0 0.0
  %670 = vmatmul.mubr.f32.gmra.mrb[0].mxu0 %v472
  %v671 = vpop.f32.mrb[0].mxu0
  %v672 = vadd.f32 %v351, %v671
  %v673 = vpop.f32.mrb[0].mxu0
  %674 = vmatprep.mubr.f32.mxu0 0.0
  %675 = vmatmul.mubr.f32.gmra.mrb[0].mxu0 %v475
  %v676 = vpop.f32.mrb[0].mxu0
  %v677 = vadd.f32 %v356, %v676
  %v678 = vpop.f32.mrb[0].mxu0
  %679 = vmatprep.mubr.f32.mxu0 0.0
  %680 = vmatmul.mubr.f32.gmra.mrb[0].mxu0 %v478
  %v681 = vpop.f32.mrb[0].mxu0
  %v682 = vadd.f32 %v361, %v681
  %v683 = vpop.f32.mrb[0].mxu0
  %684 = vmatprep.mubr.f32.mxu0 0.0
  %685 = vmatmul.mubr.f32.gmra.mrb[0].mxu0 %v481
  %v686 = vpop.f32.mrb[0].mxu0
  %v687 = vadd.f32 %v366, %v686
  %v688 = vpop.f32.mrb[0].mxu0
  %689 = vmatprep.mubr.f32.mxu0 0.0
  %690 = vmatmul.mubr.f32.gmra.mrb[0].mxu0 %v484
  %v691 = vpop.f32.mrb[0].mxu0
  %v692 = vadd.f32 %v371, %v691
  %v693 = vpop.f32.mrb[0].mxu0
  %694 = vmatprep.mubr.f32.mxu0 0.0
  %695 = vmatmul.mubr.f32.gmra.mrb[0].mxu0 %v487
  %v696 = vpop.f32.mrb[0].mxu0
  %v697 = vadd.f32 %v376, %v696
  %v698 = vpop.f32.mrb[0].mxu0
  %699 = vmatprep.mubr.f32.mxu0 0.0
  %700 = vmatmul.mubr.f32.gmra.mrb[0].mxu0 %v490
  %v701 = vpop.f32.mrb[0].mxu0
  %v702 = vadd.f32 %v381, %v701
  %v703 = vpop.f32.mrb[0].mxu0
  %704 = vmatprep.mubr.f32.mxu0 0.0
  %705 = vmatmul.mubr.f32.gmra.mrb[0].mxu0 %v493
  %v706 = vpop.f32.mrb[0].mxu0
  %v707 = vadd.f32 %v386, %v706
  %v708 = vpop.f32.mrb[0].mxu0
  %709 = vmatprep.mubr.f32.mxu0 0.0
  %710 = vmatmul.mubr.f32.gmra.mrb[0].mxu0 %v496
  %v711 = vpop.f32.mrb[0].mxu0
  %v712 = vadd.f32 %v391, %v711
  %v713 = vpop.f32.mrb[0].mxu0
  %714 = vmatprep.mubr.f32.mxu0 0.0
  %715 = vmatmul.mubr.f32.gmra.mrb[0].mxu0 %v499
  %v716 = vpop.f32.mrb[0].mxu0
  %v717 = vadd.f32 %v396, %v716
  %v718 = vpop.f32.mrb[0].mxu0
  %719 = vmatprep.mubr.f32.mxu0 0.0
  %720 = vmatmul.mubr.f32.gmra.mrb[0].mxu0 %v502
  %v721 = vpop.f32.mrb[0].mxu0
  %v722 = vadd.f32 %v401, %v721
  %v723 = vpop.f32.mrb[0].mxu0
  %724 = vmatprep.mubr.f32.mxu0 0.0
  %725 = vmatmul.mubr.f32.gmra.mrb[0].mxu0 %v505
  %v726 = vpop.f32.mrb[0].mxu0
  %v727 = vadd.f32 %v406, %v726
  %v728 = vpop.f32.mrb[0].mxu0
  %729 = vmatprep.mubr.f32.mxu0 0.0
  %730 = vmatmul.mubr.f32.gmra.mrb[0].mxu0 %v508
  %v731 = vpop.f32.mrb[0].mxu0
  %v732 = vadd.f32 %v411, %v731
  %v733 = vpop.f32.mrb[0].mxu0
  %734 = vdwg.mxu0
  %v735 = vld [vmem:[%s4] sm:$0x1]
  %v737 = vlaneseq
  %v738 = vshrl.u32 %v737, 7
  %v739 = vsub.s32 0, %v738
  %v740 = vrot.slane %v735, %v739
  %v742 = vadd.f32 %v577, %v740
  %v743 = vadd.f32 %v582, %v740
  %v744 = vadd.f32 %v587, %v740
  %v745 = vadd.f32 %v592, %v740
  %v746 = vadd.f32 %v597, %v740
  %v747 = vadd.f32 %v602, %v740
  %v748 = vadd.f32 %v607, %v740
  %v749 = vadd.f32 %v612, %v740
  %v750 = vadd.f32 %v617, %v740
  %v751 = vadd.f32 %v622, %v740
  %v752 = vadd.f32 %v627, %v740
  %v753 = vadd.f32 %v632, %v740
  %v754 = vadd.f32 %v637, %v740
  %v755 = vadd.f32 %v642, %v740
  %v756 = vadd.f32 %v647, %v740
  %v757 = vadd.f32 %v652, %v740
  %v758 = vadd.f32 %v657, %v740
  %v759 = vadd.f32 %v662, %v740
  %v760 = vadd.f32 %v667, %v740
  %v761 = vadd.f32 %v672, %v740
  %v762 = vadd.f32 %v677, %v740
  %v763 = vadd.f32 %v682, %v740
  %v764 = vadd.f32 %v687, %v740
  %v765 = vadd.f32 %v692, %v740
  %v766 = vadd.f32 %v697, %v740
  %v767 = vadd.f32 %v702, %v740
  %v768 = vadd.f32 %v707, %v740
  %v769 = vadd.f32 %v712, %v740
  %v770 = vadd.f32 %v717, %v740
  %v771 = vadd.f32 %v722, %v740
  %v772 = vadd.f32 %v727, %v740
  %v773 = vadd.f32 %v732, %v740
  %vm774 = vcmask 130048
  %775 = vst.msk [vmem:[%s5] sm:$0xff] %vm774, %v742
  %776 = vst.msk [vmem:[%s5 + $0x8] sm:$0xff] %vm774, %v743
  %777 = vst.msk [vmem:[%s5 + $0x10] sm:$0xff] %vm774, %v744
  %778 = vst.msk [vmem:[%s5 + $0x18] sm:$0xff] %vm774, %v745
  %779 = vst.msk [vmem:[%s5 + $0x20] sm:$0xff] %vm774, %v746
  %780 = vst.msk [vmem:[%s5 + $0x28] sm:$0xff] %vm774, %v747
  %781 = vst.msk [vmem:[%s5 + $0x30] sm:$0xff] %vm774, %v748
  %782 = vst.msk [vmem:[%s5 + $0x38] sm:$0xff] %vm774, %v749
  %783 = vst.msk [vmem:[%s5 + $0x40] sm:$0xff] %vm774, %v750
  %784 = vst.msk [vmem:[%s5 + $0x48] sm:$0xff] %vm774, %v751
  %785 = vst.msk [vmem:[%s5 + $0x50] sm:$0xff] %vm774, %v752
  %786 = vst.msk [vmem:[%s5 + $0x58] sm:$0xff] %vm774, %v753
  %787 = vst.msk [vmem:[%s5 + $0x60] sm:$0xff] %vm774, %v754
  %788 = vst.msk [vmem:[%s5 + $0x68] sm:$0xff] %vm774, %v755
  %789 = vst.msk [vmem:[%s5 + $0x70] sm:$0xff] %vm774, %v756
  %790 = vst.msk [vmem:[%s5 + $0x78] sm:$0xff] %vm774, %v757
  %791 = vst.msk [vmem:[%s5 + $0x80] sm:$0xff] %vm774, %v758
  %792 = vst.msk [vmem:[%s5 + $0x88] sm:$0xff] %vm774, %v759
  %793 = vst.msk [vmem:[%s5 + $0x90] sm:$0xff] %vm774, %v760
  %794 = vst.msk [vmem:[%s5 + $0x98] sm:$0xff] %vm774, %v761
  %795 = vst.msk [vmem:[%s5 + $0xa0] sm:$0xff] %vm774, %v762
  %796 = vst.msk [vmem:[%s5 + $0xa8] sm:$0xff] %vm774, %v763
  %797 = vst.msk [vmem:[%s5 + $0xb0] sm:$0xff] %vm774, %v764
  %798 = vst.msk [vmem:[%s5 + $0xb8] sm:$0xff] %vm774, %v765
  %799 = vst.msk [vmem:[%s5 + $0xc0] sm:$0xff] %vm774, %v766
  %800 = vst.msk [vmem:[%s5 + $0xc8] sm:$0xff] %vm774, %v767
  %801 = vst.msk [vmem:[%s5 + $0xd0] sm:$0xff] %vm774, %v768
  %802 = vst.msk [vmem:[%s5 + $0xd8] sm:$0xff] %vm774, %v769
  %803 = vst.msk [vmem:[%s5 + $0xe0] sm:$0xff] %vm774, %v770
  %804 = vst.msk [vmem:[%s5 + $0xe8] sm:$0xff] %vm774, %v771
  %805 = vst.msk [vmem:[%s5 + $0xf0] sm:$0xff] %vm774, %v772
  %806 = vst.msk [vmem:[%s5 + $0xf8] sm:$0xff] %vm774, %v773
  // Predicated region
  $region22: #{fwd.1} parent=0 // pred_check
    _
  $region23: #{fwd.1} parent=0 // pred_check_branch
    %808 = sbr.rel (0) target = $region25
  $region24: #{fwd.1} parent=0 // pred_region
    _
  $region25: #{fwd.1} parent=0 // pred_fallthru
    _
  // Predicated region
  $region26: #{fwd.1} parent=0 // pred_check
    _
  $region27: #{fwd.1} parent=0 // pred_check_branch
    %810 = sbr.rel (0) target = $region29
  $region28: #{fwd.1} parent=0 // pred_region
    _
  $region29: #{fwd.1} parent=0 // pred_fallthru
    _

</llo_original>
